<compile_context>
chip_gen: v7x
topology: tpu7x:2x2x1
jax: 0.10.0
libtpu: 0.0.40
codegen_flags: <defaults>
</compile_context>

<pallas_src>
import jax
import jax.numpy as jnp
from jax.experimental import pallas as pl
from jax.experimental.pallas import tpu as pltpu


def _feature_conv_kernel(x_ref, w_ref, b_ref, o_ref):
    # x_ref: (bn, C_in, tL)   input tile, native NCL layout (L on lanes)
    # w_ref: (C_out, C_in)    BN-folded pointwise-conv weight (VMEM-resident)
    # b_ref: (C_out, 1)       BN-folded bias (VMEM-resident)
    # o_ref: (bn, C_out, tL)  output tile (L on lanes)
    w = w_ref[...].astype(jnp.float32)
    b = b_ref[...]
    bn = x_ref.shape[0]
    for i in range(bn):  # bn is a small static Python int baked into the block shape
        y = jnp.dot(w, x_ref[i].astype(jnp.float32),
                    preferred_element_type=jnp.float32)      # (C_out, tL)
        o_ref[i] = jnp.maximum(y + b, 0.0).astype(o_ref.dtype)


def feature_conv(x, params, *, tl=2048, max_bn=16):
    """x: (N, C_in, L) float32. Returns (N, C_out, L) float32 (inference semantics)."""
    (gamma1, beta1, mean1, var1,
     w,                                  # (C_out, C_in, 1) conv weight
     gamma2, beta2, mean2, var2) = params
    eps = 1e-5

    N, C_in, L = x.shape
    C_out = w.shape[0]

    # Fold BN running stats (eval mode) into the conv weight + a single bias.
    s1 = gamma1 / jnp.sqrt(var1 + eps)
    b1 = beta1 - mean1 * s1
    s2 = gamma2 / jnp.sqrt(var2 + eps)
    b2 = beta2 - mean2 * s2
    w0 = w[:, :, 0]                                                 # (C_out, C_in)
    w_fold = (s2[:, None] * w0 * s1[None, :]).astype(jnp.float32)   # (C_out, C_in)
    bias_fold = (s2 * (w0 @ b1) + b2).astype(jnp.float32).reshape(C_out, 1)

    if L > tl:
        # Long-sequence path: lane-dense L tiles, one batch element per grid step.
        tL = tl
        bn = 1
        Lp = ((L + tL - 1) // tL) * tL
        xp = x if Lp == L else jnp.pad(x, ((0, 0), (0, 0), (0, Lp - L)))
    else:
        # Short-sequence path: full L per block (block dim == full dim is always legal);
        # pack several batch elements per grid step to amortize per-step overhead.
        tL = L
        Lp = L
        xp = x
        target = max(1, min(max_bn, tl // max(L, 1)))
        bn = 1
        for d in range(1, N + 1):          # largest divisor of N not exceeding target
            if N % d == 0 and d <= target:
                bn = d

    grid = (N // bn, Lp // tL)

    out = pl.pallas_call(
        _feature_conv_kernel,
        out_shape=jax.ShapeDtypeStruct((N, C_out, Lp), x.dtype),
        grid_spec=pltpu.PrefetchScalarGridSpec(
            num_scalar_prefetch=0,
            grid=grid,
            in_specs=[
                pl.BlockSpec((bn, C_in, tL), lambda n, l: (n, 0, l)),
                pl.BlockSpec((C_out, C_in), lambda n, l: (0, 0)),   # resident weight
                pl.BlockSpec((C_out, 1), lambda n, l: (0, 0)),      # resident bias
            ],
            out_specs=pl.BlockSpec((bn, C_out, tL), lambda n, l: (n, 0, l)),
        ),
        compiler_params=pltpu.CompilerParams(
            dimension_semantics=("parallel", "parallel")),
    )(xp, w_fold, bias_fold)

    if Lp != L:
        out = out[:, :, :L]
    return out


def make_params(in_chn, out_chn):
    """Deterministic synthetic parameters matching FeatureConv.__init__ shapes."""
    key = jax.random.PRNGKey(0)
    k_w, k_m1, k_v1, k_m2, k_v2, k_g1, k_g2 = jax.random.split(key, 7)
    gamma1 = 1.0 + 0.1 * jax.random.normal(k_g1, (in_chn,), jnp.float32)
    beta1 = jnp.linspace(-0.2, 0.2, in_chn, dtype=jnp.float32)
    mean1 = 0.1 * jax.random.normal(k_m1, (in_chn,), jnp.float32)
    var1 = 1.0 + 0.1 * jnp.abs(jax.random.normal(k_v1, (in_chn,), jnp.float32))
    w = 0.5 * jax.random.normal(k_w, (out_chn, in_chn, 1), jnp.float32)
    gamma2 = 1.0 + 0.1 * jax.random.normal(k_g2, (out_chn,), jnp.float32)
    beta2 = jnp.linspace(-0.1, 0.1, out_chn, dtype=jnp.float32)
    mean2 = 0.1 * jax.random.normal(k_m2, (out_chn,), jnp.float32)
    var2 = 1.0 + 0.1 * jnp.abs(jax.random.normal(k_v2, (out_chn,), jnp.float32))
    return (gamma1, beta1, mean1, var1, w, gamma2, beta2, mean2, var2)


def feature_conv_ref(x, params):
    """Pure-JAX reference of the PyTorch forward (eval mode)."""
    (g1, b1, m1, v1, w, g2, b2, m2, v2) = params
    eps = 1e-5
    xn = (x - m1[None, :, None]) / jnp.sqrt(v1[None, :, None] + eps) \
         * g1[None, :, None] + b1[None, :, None]
    y = jnp.einsum('oc,ncl->nol', w[:, :, 0], xn)
    y = (y - m2[None, :, None]) / jnp.sqrt(v2[None, :, None] + eps) \
        * g2[None, :, None] + b2[None, :, None]
    return jnp.maximum(y, 0.0)


if __name__ == "__main__":
    # Small shape consistent with the module (N, C_in, L) -> (N, C_out, L).
    N, C_in, L, C_out = 2, 4, 16, 32
    key = jax.random.PRNGKey(0)
    x = jax.random.normal(key, (N, C_in, L), jnp.float32)
    params = make_params(C_in, C_out)

    out = jax.block_until_ready(feature_conv(x, params))
    ref = feature_conv_ref(x, params)
    assert out.shape == (N, C_out, L)
    assert jnp.allclose(out, ref, atol=1e-4, rtol=1e-4)

    # Lane-dense tiled long-L path (L > tile).
    L2 = 2048
    x2 = jax.random.normal(jax.random.PRNGKey(1), (N, C_in, L2), jnp.float32)
    out2 = jax.block_until_ready(feature_conv(x2, params, tl=1024))
    ref2 = feature_conv_ref(x2, params)
    assert out2.shape == (N, C_out, L2)
    assert jnp.allclose(out2, ref2, atol=1e-4, rtol=1e-4)

    # Realistic ParticleNet regime: many events, ~100 points, non-128-multiple L
    # (exercises the batch-packed small-L path, bn > 1).
    N3, L3 = 8, 96
    x3 = jax.random.normal(jax.random.PRNGKey(2), (N3, C_in, L3), jnp.float32)
    out3 = jax.block_until_ready(feature_conv(x3, params))
    ref3 = feature_conv_ref(x3, params)
    assert out3.shape == (N3, C_out, L3)
    assert jnp.allclose(out3, ref3, atol=1e-4, rtol=1e-4)

    print("KERNEL_OK")
</pallas_src>

<mosaic_0001>
module attributes {stable_mosaic.version = 11 : i64} {
  func.func @_feature_conv_kernel(%arg0: i32, %arg1: i32, %arg2: memref<2x4x16xf32, #tpu.memory_space<vmem>>, %arg3: memref<32x4xf32, #tpu.memory_space<vmem>>, %arg4: memref<32x1xf32, #tpu.memory_space<vmem>>, %arg5: memref<2x32x16xf32, #tpu.memory_space<vmem>>) attributes {dimension_semantics = [#tpu.dimension_semantics<parallel>, #tpu.dimension_semantics<parallel>], iteration_bounds = array<i64: 1, 1>, scalar_prefetch = 0 : i64, scratch_operands = 0 : i64, tpu.core_type = #tpu.core_type<tc>, window_params = [{transform_indices = @transform_0, window_bounds = array<i64: 2, 4, 16>}, {pipeline_mode = #tpu.pipeline_mode<synchronous>, transform_indices = @transform_1, window_bounds = array<i64: 32, 4>}, {pipeline_mode = #tpu.pipeline_mode<synchronous>, transform_indices = @transform_2, window_bounds = array<i64: 32, 1>}, {transform_indices = @transform_3, window_bounds = array<i64: 2, 32, 16>}]} {
    %c0 = arith.constant 0 : index
    %c0_0 = arith.constant 0 : index
    %0 = vector.load %arg3[%c0, %c0_0] : memref<32x4xf32, #tpu.memory_space<vmem>>, vector<32x4xf32>
    %c0_1 = arith.constant 0 : index
    %c0_2 = arith.constant 0 : index
    %1 = vector.load %arg4[%c0_1, %c0_2] : memref<32x1xf32, #tpu.memory_space<vmem>>, vector<32x1xf32>
    %c0_3 = arith.constant 0 : index
    %c0_4 = arith.constant 0 : index
    %c0_5 = arith.constant 0 : index
    %2 = vector.load %arg2[%c0_3, %c0_4, %c0_5] : memref<2x4x16xf32, #tpu.memory_space<vmem>>, vector<1x4x16xf32>
    %3 = vector.shape_cast %2 : vector<1x4x16xf32> to vector<4x16xf32>
    %cst = arith.constant dense<0.000000e+00> : vector<32x16xf32>
    %4 = tpu.matmul %0, %3, %cst {dimension_numbers = #tpu.dot_dimension_numbers<[1], [0], [0], [1], [0, 0, 1, 1], [], []>} : vector<32x4xf32>, vector<4x16xf32>, vector<32x16xf32> -> vector<32x16xf32>
    %5 = vector.broadcast %1 : vector<32x1xf32> to vector<32x16xf32>
    %6 = arith.addf %4, %5 : vector<32x16xf32>
    %cst_6 = arith.constant 0.000000e+00 : f32
    %7 = vector.broadcast %cst_6 : f32 to vector<32x16xf32>
    %8 = arith.maximumf %6, %7 : vector<32x16xf32>
    %c0_7 = arith.constant 0 : index
    %c0_8 = arith.constant 0 : index
    %c0_9 = arith.constant 0 : index
    %9 = vector.load %arg5[%c0_7, %c0_8, %c0_9] : memref<2x32x16xf32, #tpu.memory_space<vmem>>, vector<1x32x16xf32>
    %10 = vector.shape_cast %9 : vector<1x32x16xf32> to vector<32x16xf32>
    %11 = vector.shape_cast %8 : vector<32x16xf32> to vector<1x32x16xf32>
    tpu.vector_store %arg5[%c0_7, %c0_8, %c0_9], %11 {strides = array<i32>} : memref<2x32x16xf32, #tpu.memory_space<vmem>>, vector<1x32x16xf32>,
    %c1 = arith.constant 1 : index
    %c0_10 = arith.constant 0 : index
    %c0_11 = arith.constant 0 : index
    %12 = vector.load %arg2[%c1, %c0_10, %c0_11] : memref<2x4x16xf32, #tpu.memory_space<vmem>>, vector<1x4x16xf32>
    %13 = vector.shape_cast %12 : vector<1x4x16xf32> to vector<4x16xf32>
    %cst_12 = arith.constant dense<0.000000e+00> : vector<32x16xf32>
    %14 = tpu.matmul %0, %13, %cst_12 {dimension_numbers = #tpu.dot_dimension_numbers<[1], [0], [0], [1], [0, 0, 1, 1], [], []>} : vector<32x4xf32>, vector<4x16xf32>, vector<32x16xf32> -> vector<32x16xf32>
    %15 = vector.broadcast %1 : vector<32x1xf32> to vector<32x16xf32>
    %16 = arith.addf %14, %15 : vector<32x16xf32>
    %cst_13 = arith.constant 0.000000e+00 : f32
    %17 = vector.broadcast %cst_13 : f32 to vector<32x16xf32>
    %18 = arith.maximumf %16, %17 : vector<32x16xf32>
    %c1_14 = arith.constant 1 : index
    %c0_15 = arith.constant 0 : index
    %c0_16 = arith.constant 0 : index
    %19 = vector.load %arg5[%c1_14, %c0_15, %c0_16] : memref<2x32x16xf32, #tpu.memory_space<vmem>>, vector<1x32x16xf32>
    %20 = vector.shape_cast %19 : vector<1x32x16xf32> to vector<32x16xf32>
    %21 = vector.shape_cast %18 : vector<32x16xf32> to vector<1x32x16xf32>
    tpu.vector_store %arg5[%c1_14, %c0_15, %c0_16], %21 {strides = array<i32>} : memref<2x32x16xf32, #tpu.memory_space<vmem>>, vector<1x32x16xf32>,
    return
  }
  func.func @transform_0(%arg0: i32, %arg1: i32) -> (i32, i32, i32) {
    %c0_i32 = arith.constant 0 : i32
    %c0_i32_0 = arith.constant 0 : i32
    return %arg0, %c0_i32, %arg1 : i32, i32, i32
  }
  func.func @transform_1(%arg0: i32, %arg1: i32) -> (i32, i32) {
    %c0_i32 = arith.constant 0 : i32
    %c0_i32_0 = arith.constant 0 : i32
    %c0_i32_1 = arith.constant 0 : i32
    return %c0_i32, %c0_i32_0 : i32, i32
  }
  func.func @transform_2(%arg0: i32, %arg1: i32) -> (i32, i32) {
    %c0_i32 = arith.constant 0 : i32
    %c0_i32_0 = arith.constant 0 : i32
    %c0_i32_1 = arith.constant 0 : i32
    return %c0_i32, %c0_i32_0 : i32, i32
  }
  func.func @transform_3(%arg0: i32, %arg1: i32) -> (i32, i32, i32) {
    %c0_i32 = arith.constant 0 : i32
    %c0_i32_0 = arith.constant 0 : i32
    return %arg0, %c0_i32, %arg1 : i32, i32, i32
  }
}

</mosaic_0001>

<llo_original>
// kernel: tpu_custom_call.1
$region0: #{tpu_custom_call.1}
  #allocation0 [shape = 'u32[]', space=smem, size = 0x4, offset = 0x4, fixed_abs, tag = 'smem constant byte address 0x4 - core index']
  #allocation1 [shape = 'u32[144,128]{1,0:T(1,128)}', space=vmem, size = 0x12000, scoped, tag = 'internal scratch']
  %s0 = inlined_call_operand.vmem [shape: f32[2,4,16], index: 0, kind: input, shape index: {}]
  %s1 = inlined_call_operand.vmem [shape: f32[32,4], index: 1, kind: input, shape index: {}]
  %s2 = inlined_call_operand.vmem [shape: f32[32,1], index: 2, kind: input, shape index: {}]
  %s3 = inlined_call_operand.vmem [shape: f32[2,32,16], index: 3, kind: output, shape index: {}]
  %s4 = sld [smem:[#allocation0]]
  $region22: #{tpu_custom_call.1} parent=0
    _
  %s6 = ssub.s32 1, %s4
  %s7 = scalar_select 0, %s6, %s4
  // Predicated region
  $region2: #{tpu_custom_call.1} parent=0 // pred_check
    _
  $region3: #{tpu_custom_call.1} parent=0 // pred_check_branch
    %9 = sbr.rel (0) target = $region5
  $region4: #{tpu_custom_call.1} parent=0 // pred_region
    _
  $region5: #{tpu_custom_call.1} parent=0 // pred_fallthru
    _
  // Predicated region
  $region6: #{tpu_custom_call.1} parent=0 // pred_check
    _
  $region7: #{tpu_custom_call.1} parent=0 // pred_check_branch
    %11 = sbr.rel (0) target = $region9
  $region8: #{tpu_custom_call.1} parent=0 // pred_region
    _
  $region9: #{tpu_custom_call.1} parent=0 // pred_fallthru
    _
  // Predicated region
  $region10: #{tpu_custom_call.1} parent=0 // pred_check
    _
  $region11: #{tpu_custom_call.1} parent=0 // pred_check_branch
    %13 = sbr.rel (0) target = $region13
  $region12: #{tpu_custom_call.1} parent=0 // pred_region
    _
  $region13: #{tpu_custom_call.1} parent=0 // pred_fallthru
    _
  %v14 = vld [vmem:[%s1] sm:$0xff]
  %v15 = vld [vmem:[%s1 + $0x8] sm:$0xff]
  %v16 = vld [vmem:[%s1 + $0x10] sm:$0xff]
  %v17 = vld [vmem:[%s1 + $0x18] sm:$0xff]
  %v18 = vld [vmem:[%s2] sm:$0xff]
  %v19 = vld [vmem:[%s2 + $0x8] sm:$0xff]
  %v20 = vld [vmem:[%s2 + $0x10] sm:$0xff]
  %v21 = vld [vmem:[%s2 + $0x18] sm:$0xff]
  %v22 = vld [vmem:[%s0] sm:$0xf]
  %24 = vset.pattern.permute.xlu0 0
  %25 = vperm.xlu0 %24, %v18
  %v26 = vpop.permute.xlu0 %25
  %29 = vset.pattern.permute.xlu0 0
  %30 = vperm.xlu0 %29, %v19
  %v31 = vpop.permute.xlu0 %30
  %34 = vset.pattern.permute.xlu0 0
  %35 = vperm.xlu0 %34, %v20
  %v36 = vpop.permute.xlu0 %35
  %39 = vset.pattern.permute.xlu0 0
  %40 = vperm.xlu0 %39, %v21
  %v41 = vpop.permute.xlu0 %40
  %vm43 = vcmask 31744
  %v45 = vsel %vm43, %v14, 0
  %v48 = vsel %vm43, %v15, 0
  %v51 = vsel %vm43, %v16, 0
  %v54 = vsel %vm43, %v17, 0
  %vm56 = vcmask 1043456
  %v58 = vsel %vm56, %v22, 0
  %60 = vmatprep.subr.mxu0 0.0
  %61 = vmatpush1.msra.mxu0 %v58
  %62 = vmatprep.subr.mxu0 0.0
  %63 = vmatpush1.msra.mxu0 0.0
  %64 = vmatprep.subr.mxu0 0.0
  %65 = vmatpush1.msra.mxu0 0.0
  %66 = vmatprep.subr.mxu0 0.0
  %67 = vmatpush1.msra.mxu0 0.0
  %68 = vmatprep.subr.mxu0 0.0
  %69 = vmatpush1.msra.mxu0 0.0
  %70 = vmatprep.subr.mxu0 0.0
  %71 = vmatpush1.msra.mxu0 0.0
  %72 = vmatprep.subr.mxu0 0.0
  %73 = vmatpush1.msra.mxu0 0.0
  %74 = vmatprep.subr.mxu0 0.0
  %75 = vmatpush1.msra.mxu0 0.0
  %76 = vmatprep.subr.mxu0 0.0
  %77 = vmatpush1.msra.mxu0 0.0
  %78 = vmatprep.subr.mxu0 0.0
  %79 = vmatpush1.msra.mxu0 0.0
  %80 = vmatprep.subr.mxu0 0.0
  %81 = vmatpush1.msra.mxu0 0.0
  %82 = vmatprep.subr.mxu0 0.0
  %83 = vmatpush1.msra.mxu0 0.0
  %84 = vmatprep.subr.mxu0 0.0
  %85 = vmatpush1.msra.mxu0 0.0
  %86 = vmatprep.subr.mxu0 0.0
  %87 = vmatpush1.msra.mxu0 0.0
  %88 = vmatprep.subr.mxu0 0.0
  %89 = vmatpush1.msra.mxu0 0.0
  %90 = vmatprep.subr.mxu0 0.0
  %91 = vmatpush1.msra.mxu0 0.0
  %92 = vmatprep.subr.mxu0 0.0
  %93 = vmatpush1.msra.mxu0 0.0
  %94 = vmatprep.subr.mxu0 0.0
  %95 = vmatpush1.msra.mxu0 0.0
  %96 = vmatprep.subr.mxu0 0.0
  %97 = vmatpush1.msra.mxu0 0.0
  %98 = vmatprep.subr.mxu0 0.0
  %99 = vmatpush1.msra.mxu0 0.0
  %100 = vmatprep.subr.mxu0 0.0
  %101 = vmatpush1.msra.mxu0 0.0
  %102 = vmatprep.subr.mxu0 0.0
  %103 = vmatpush1.msra.mxu0 0.0
  %104 = vmatprep.subr.mxu0 0.0
  %105 = vmatpush1.msra.mxu0 0.0
  %106 = vmatprep.subr.mxu0 0.0
  %107 = vmatpush1.msra.mxu0 0.0
  %108 = vmatprep.subr.mxu0 0.0
  %109 = vmatpush1.msra.mxu0 0.0
  %110 = vmatprep.subr.mxu0 0.0
  %111 = vmatpush1.msra.mxu0 0.0
  %112 = vmatprep.subr.mxu0 0.0
  %113 = vmatpush1.msra.mxu0 0.0
  %114 = vmatprep.subr.mxu0 0.0
  %115 = vmatpush1.msra.mxu0 0.0
  %116 = vmatprep.subr.mxu0 0.0
  %117 = vmatpush1.msra.mxu0 0.0
  %118 = vmatprep.subr.mxu0 0.0
  %119 = vmatpush1.msra.mxu0 0.0
  %120 = vmatprep.subr.mxu0 0.0
  %121 = vmatpush1.msra.mxu0 0.0
  %122 = vmatprep.subr.mxu0 0.0
  %123 = vmatpush1.msra.mxu0 0.0
  %124 = vmatprep.mubr.f32.mxu0 0.0
  %125 = vmatmul.mubr.f32.gmra.mrb[0].mxu0 %v45
  %v126 = vpop.f32.mrb[0].mxu0
  %v127 = vadd.f32 %v26, %v126
  %v128 = vpop.f32.mrb[0].mxu0
  %129 = vmatprep.mubr.f32.mxu0 0.0
  %130 = vmatmul.mubr.f32.gmra.mrb[0].mxu0 %v48
  %v131 = vpop.f32.mrb[0].mxu0
  %v132 = vadd.f32 %v31, %v131
  %v133 = vpop.f32.mrb[0].mxu0
  %134 = vmatprep.mubr.f32.mxu0 0.0
  %135 = vmatmul.mubr.f32.gmra.mrb[0].mxu0 %v51
  %v136 = vpop.f32.mrb[0].mxu0
  %v137 = vadd.f32 %v36, %v136
  %v138 = vpop.f32.mrb[0].mxu0
  %139 = vmatprep.mubr.f32.mxu0 0.0
  %140 = vmatmul.mubr.f32.gmra.mrb[0].mxu0 %v54
  %v141 = vpop.f32.mrb[0].mxu0
  %v142 = vadd.f32 %v41, %v141
  %v143 = vpop.f32.mrb[0].mxu0
  %144 = vdwg.mxu0
  %v145 = vmax.f32 %v127, 0.0
  %v146 = vmax.f32 %v132, 0.0
  %v147 = vmax.f32 %v137, 0.0
  %v148 = vmax.f32 %v142, 0.0
  %vm149 = vcmask 130048
  %150 = vst.msk [vmem:[%s3] sm:$0xff] %vm149, %v145
  %151 = vst.msk [vmem:[%s3 + $0x8] sm:$0xff] %vm149, %v146
  %152 = vst.msk [vmem:[%s3 + $0x10] sm:$0xff] %vm149, %v147
  %153 = vst.msk [vmem:[%s3 + $0x18] sm:$0xff] %vm149, %v148
  %s154 = scalar_lea.vmem %s0, 4
  %v155 = vld [vmem:[%s154] sm:$0xf]
  %v157 = vsel %vm56, %v155, 0
  %159 = vmatprep.subr.mxu0 0.0
  %160 = vmatpush1.msra.mxu0 %v157
  %161 = vmatprep.subr.mxu0 0.0
  %162 = vmatpush1.msra.mxu0 0.0
  %163 = vmatprep.subr.mxu0 0.0
  %164 = vmatpush1.msra.mxu0 0.0
  %165 = vmatprep.subr.mxu0 0.0
  %166 = vmatpush1.msra.mxu0 0.0
  %167 = vmatprep.subr.mxu0 0.0
  %168 = vmatpush1.msra.mxu0 0.0
  %169 = vmatprep.subr.mxu0 0.0
  %170 = vmatpush1.msra.mxu0 0.0
  %171 = vmatprep.subr.mxu0 0.0
  %172 = vmatpush1.msra.mxu0 0.0
  %173 = vmatprep.subr.mxu0 0.0
  %174 = vmatpush1.msra.mxu0 0.0
  %175 = vmatprep.subr.mxu0 0.0
  %176 = vmatpush1.msra.mxu0 0.0
  %177 = vmatprep.subr.mxu0 0.0
  %178 = vmatpush1.msra.mxu0 0.0
  %179 = vmatprep.subr.mxu0 0.0
  %180 = vmatpush1.msra.mxu0 0.0
  %181 = vmatprep.subr.mxu0 0.0
  %182 = vmatpush1.msra.mxu0 0.0
  %183 = vmatprep.subr.mxu0 0.0
  %184 = vmatpush1.msra.mxu0 0.0
  %185 = vmatprep.subr.mxu0 0.0
  %186 = vmatpush1.msra.mxu0 0.0
  %187 = vmatprep.subr.mxu0 0.0
  %188 = vmatpush1.msra.mxu0 0.0
  %189 = vmatprep.subr.mxu0 0.0
  %190 = vmatpush1.msra.mxu0 0.0
  %191 = vmatprep.subr.mxu0 0.0
  %192 = vmatpush1.msra.mxu0 0.0
  %193 = vmatprep.subr.mxu0 0.0
  %194 = vmatpush1.msra.mxu0 0.0
  %195 = vmatprep.subr.mxu0 0.0
  %196 = vmatpush1.msra.mxu0 0.0
  %197 = vmatprep.subr.mxu0 0.0
  %198 = vmatpush1.msra.mxu0 0.0
  %199 = vmatprep.subr.mxu0 0.0
  %200 = vmatpush1.msra.mxu0 0.0
  %201 = vmatprep.subr.mxu0 0.0
  %202 = vmatpush1.msra.mxu0 0.0
  %203 = vmatprep.subr.mxu0 0.0
  %204 = vmatpush1.msra.mxu0 0.0
  %205 = vmatprep.subr.mxu0 0.0
  %206 = vmatpush1.msra.mxu0 0.0
  %207 = vmatprep.subr.mxu0 0.0
  %208 = vmatpush1.msra.mxu0 0.0
  %209 = vmatprep.subr.mxu0 0.0
  %210 = vmatpush1.msra.mxu0 0.0
  %211 = vmatprep.subr.mxu0 0.0
  %212 = vmatpush1.msra.mxu0 0.0
  %213 = vmatprep.subr.mxu0 0.0
  %214 = vmatpush1.msra.mxu0 0.0
  %215 = vmatprep.subr.mxu0 0.0
  %216 = vmatpush1.msra.mxu0 0.0
  %217 = vmatprep.subr.mxu0 0.0
  %218 = vmatpush1.msra.mxu0 0.0
  %219 = vmatprep.subr.mxu0 0.0
  %220 = vmatpush1.msra.mxu0 0.0
  %221 = vmatprep.subr.mxu0 0.0
  %222 = vmatpush1.msra.mxu0 0.0
  %223 = vmatprep.mubr.f32.mxu0 0.0
  %224 = vmatmul.mubr.f32.gmra.mrb[0].mxu0 %v45
  %v225 = vpop.f32.mrb[0].mxu0
  %v226 = vadd.f32 %v26, %v225
  %v227 = vpop.f32.mrb[0].mxu0
  %228 = vmatprep.mubr.f32.mxu0 0.0
  %229 = vmatmul.mubr.f32.gmra.mrb[0].mxu0 %v48
  %v230 = vpop.f32.mrb[0].mxu0
  %v231 = vadd.f32 %v31, %v230
  %v232 = vpop.f32.mrb[0].mxu0
  %233 = vmatprep.mubr.f32.mxu0 0.0
  %234 = vmatmul.mubr.f32.gmra.mrb[0].mxu0 %v51
  %v235 = vpop.f32.mrb[0].mxu0
  %v236 = vadd.f32 %v36, %v235
  %v237 = vpop.f32.mrb[0].mxu0
  %238 = vmatprep.mubr.f32.mxu0 0.0
  %239 = vmatmul.mubr.f32.gmra.mrb[0].mxu0 %v54
  %v240 = vpop.f32.mrb[0].mxu0
  %v241 = vadd.f32 %v41, %v240
  %v242 = vpop.f32.mrb[0].mxu0
  %243 = vdwg.mxu0
  %v244 = vmax.f32 %v226, 0.0
  %v245 = vmax.f32 %v231, 0.0
  %v246 = vmax.f32 %v236, 0.0
  %v247 = vmax.f32 %v241, 0.0
  %s248 = scalar_lea.vmem %s3, 32
  %249 = vst.msk [vmem:[%s248] sm:$0xff] %vm149, %v244
  %250 = vst.msk [vmem:[%s248 + $0x8] sm:$0xff] %vm149, %v245
  %251 = vst.msk [vmem:[%s248 + $0x10] sm:$0xff] %vm149, %v246
  %252 = vst.msk [vmem:[%s248 + $0x18] sm:$0xff] %vm149, %v247
  // Predicated region
  $region14: #{tpu_custom_call.1} parent=0 // pred_check
    _
  $region15: #{tpu_custom_call.1} parent=0 // pred_check_branch
    %254 = sbr.rel (0) target = $region17
  $region16: #{tpu_custom_call.1} parent=0 // pred_region
    _
  $region17: #{tpu_custom_call.1} parent=0 // pred_fallthru
    _
  // Predicated region
  $region18: #{tpu_custom_call.1} parent=0 // pred_check
    _
  $region19: #{tpu_custom_call.1} parent=0 // pred_check_branch
    %256 = sbr.rel (0) target = $region21
  $region20: #{tpu_custom_call.1} parent=0 // pred_region
    _
  $region21: #{tpu_custom_call.1} parent=0 // pred_fallthru
    _

</llo_original>
